<compile_context>
chip_gen: v7x
topology: tpu7x:2x2x1
jax: 0.10.0
libtpu: 0.0.40
codegen_flags: <defaults>
</compile_context>

<pallas_src>
import functools
import random

import jax
import jax.numpy as jnp
from jax.experimental import pallas as pl
from jax.experimental.pallas import tpu as pltpu

_LANE = 512                      # lane-dense last dim (multiple of 128)
_BLOCK_BYTES = 2 * 1024 * 1024   # ~2 MiB per buffer: VMEM-safe on v5e/v6e/v7x


def _round_up(x: int, m: int) -> int:
    return (x + m - 1) // m * m


def _choose_block_rows(rows: int, cols: int, itemsize: int) -> int:
    """Row-tile size: multiple of 32 (native sublane packing for every dtype),
    <= ~2 MiB per buffer, aiming for >= 4 grid steps so the row-parallel grid
    both double-buffers its DMAs and splits across v7x's two TensorCores."""
    if rows <= 32:
        return rows  # one block == full dim (layout-legal for any row count)
    cap = max(32, (_BLOCK_BYTES // (cols * itemsize)) // 32 * 32)
    target = _round_up(pl.cdiv(rows, 4), 32)
    return min(rows, max(32, min(cap, target)))


def _make_affine_kernel(scale: float, shift: float, out_dtype):
    """out = x * scale + shift, computed in f32 on the VPU.  scale/shift are
    Python floats -> compile-time constants (no extra operands, no broadcast)."""
    round_to_int = jnp.issubdtype(jnp.dtype(out_dtype), jnp.integer)

    def kernel(x_ref, o_ref):
        y = x_ref[...].astype(jnp.float32) * scale + shift
        if round_to_int:
            y = jnp.round(y)  # avoid trunc-toward-zero bias on integer data
        o_ref[...] = y.astype(o_ref.dtype)

    return kernel


@functools.partial(jax.jit, static_argnames=("scale", "shift"))
def _augment_tensor(x: jax.Array, *, scale: float, shift: float) -> jax.Array:
    """Apply the affine augmentation to one tensor with a single pallas_call."""
    n = int(x.size)
    orig_shape = x.shape
    itemsize = jnp.dtype(x.dtype).itemsize

    flat = x.reshape(-1)  # metadata-only inside jit
    if n % _LANE == 0:
        cols = _LANE
    elif n % 128 == 0:
        cols = 128
    elif n * itemsize <= _BLOCK_BYTES:
        cols = n  # single full block; any width is layout-legal
    else:
        # Rare fallback: large tensor whose size is not 128-aligned.
        # TODO(synk): this path re-pads (one extra HBM pass); none of the
        # module's sensor tensors hit it.
        cols = _LANE
        flat = jnp.pad(flat, (0, _round_up(n, _LANE) - n))

    rows = flat.size // cols
    x2 = flat.reshape(rows, cols)
    block_rows = _choose_block_rows(rows, cols, itemsize)
    grid = (pl.cdiv(rows, block_rows),)

    out2 = pl.pallas_call(
        _make_affine_kernel(scale, shift, x.dtype),
        out_shape=jax.ShapeDtypeStruct((rows, cols), x.dtype),
        grid=grid,
        in_specs=[pl.BlockSpec((block_rows, cols), lambda i: (i, 0))],
        out_specs=pl.BlockSpec((block_rows, cols), lambda i: (i, 0)),
        compiler_params=pltpu.CompilerParams(
            dimension_semantics=("parallel",)),
        cost_estimate=pl.CostEstimate(
            flops=2 * rows * cols,
            transcendentals=0,
            bytes_accessed=2 * rows * cols * itemsize),
    )(x2)

    out_flat = out2.reshape(-1)
    if out_flat.size != n:
        out_flat = out_flat[:n]
    return out_flat.reshape(orig_shape)


class RandomAugmentationJAX:
    """JAX/Pallas counterpart of point_frustums RandomAugmentation."""

    def __init__(self, probability: float, apply_to: set):
        self.probability = probability
        self.apply_to = apply_to
        self.apply: bool = True
        # Deterministic per-modality "augmentation parameters" (the reference
        # lidar/camera/radar hooks are abstract; a concrete affine stands in).
        self.params = {
            "lidar": (1.05, 0.10),
            "camera": (0.95, -0.05),
            "radar": (1.10, 0.20),
        }

    def __str__(self):
        return self.__class__.__name__

    def refresh(self):
        self.apply = random.random() < self.probability
        # TODO(synk): `_refresh` is abstract in the reference module; no-op here.

    # ---- concrete instantiations of the abstract per-modality hooks --------

    def lidar(self, data, metadata=None):
        s, b = self.params["lidar"]
        return _augment_tensor(data, scale=s, shift=b)

    def camera(self, data, metadata=None):
        s, b = self.params["camera"]
        return _augment_tensor(data, scale=s, shift=b)

    def radar(self, data, metadata=None):
        s, b = self.params["radar"]
        return _augment_tensor(data, scale=s, shift=b)

    def targets(self, targets):
        # TODO(synk): `targets` hook is abstract in the reference module; passthrough.
        return targets

    def metadata_hook(self, metadata):
        # TODO(synk): `metadata` hook is abstract in the reference module; passthrough.
        return metadata

    # ---- forward (same dispatch semantics as the reference) -----------------

    def forward(self, lidar, camera, radar, targets, metadata):
        if not self.apply:
            return lidar, camera, radar, targets, metadata
        if metadata is None:
            metadata = {}
        if "augmentations" not in metadata:
            metadata["augmentations"] = {}
        metadata["augmentations"][str(self)] = {}
        metadata = self.metadata_hook(metadata)

        if lidar is not None and "lidar" in self.apply_to:
            for key, value in lidar.items():
                lidar[key] = self.lidar(value, metadata)
        if camera is not None and "camera" in self.apply_to:
            for key, value in camera.items():
                camera[key] = self.camera(value, metadata)
        if radar is not None and "radar" in self.apply_to:
            for key, value in radar.items():
                radar[key] = self.radar(value, metadata)
        if targets is not None and "targets" in self.apply_to:
            targets = self.targets(targets)
        return lidar, camera, radar, targets, metadata

    __call__ = forward


if __name__ == "__main__":
    random.seed(0)
    key = jax.random.PRNGKey(0)
    k_lidar, k_camera, k_radar = jax.random.split(key, 3)

    # Small deterministic inputs consistent with the module's modalities.
    lidar = {"points": jax.random.normal(k_lidar, (256, 8), dtype=jnp.float32)}
    camera = {"CAM_FRONT": jax.random.normal(k_camera, (2, 4, 16, 16),  # NCHW
                                             dtype=jnp.float32)}
    radar = {"RADAR_FRONT": jax.random.normal(k_radar, (2, 6, 32),
                                              dtype=jnp.float32)}

    aug = RandomAugmentationJAX(probability=1.0,
                                apply_to={"lidar", "camera", "radar"})
    aug.refresh()  # probability=1.0 -> apply is deterministically True

    lidar_in = dict(lidar)
    camera_in = dict(camera)
    radar_in = dict(radar)

    lidar_out, camera_out, radar_out, targets_out, metadata_out = aug(
        lidar, camera, radar, targets=None, metadata=None)

    jax.block_until_ready(
        (lidar_out["points"], camera_out["CAM_FRONT"], radar_out["RADAR_FRONT"]))

    # Verify against the pure-JAX reference of the same semantics.
    for mod, din, dout in (("lidar", lidar_in, lidar_out),
                           ("camera", camera_in, camera_out),
                           ("radar", radar_in, radar_out)):
        s, b = aug.params[mod]
        for k in din:
            ref = din[k].astype(jnp.float32) * jnp.float32(s) + jnp.float32(b)
            assert jnp.allclose(dout[k], ref, atol=1e-5, rtol=1e-5), mod
    assert "RandomAugmentationJAX" in metadata_out["augmentations"]

    print("KERNEL_OK")
</pallas_src>

<mosaic_0001>
module attributes {stable_mosaic.version = 11 : i64} {
  func.func @kernel(%arg0: i32, %arg1: memref<4x512xf32, #tpu.memory_space<vmem>>, %arg2: memref<4x512xf32, #tpu.memory_space<vmem>>) attributes {dimension_semantics = [#tpu.dimension_semantics<parallel>], iteration_bounds = array<i64: 1>, scalar_prefetch = 0 : i64, scratch_operands = 0 : i64, tpu.core_type = #tpu.core_type<tc>, window_params = [{transform_indices = @transform_0, window_bounds = array<i64: 4, 512>}, {transform_indices = @transform_1, window_bounds = array<i64: 4, 512>}]} {
    %c0 = arith.constant 0 : index
    %c0_0 = arith.constant 0 : index
    %0 = vector.load %arg1[%c0, %c0_0] : memref<4x512xf32, #tpu.memory_space<vmem>>, vector<4x512xf32>
    %cst = arith.constant 1.050000e+00 : f32
    %1 = vector.broadcast %cst : f32 to vector<4x512xf32>
    %2 = arith.mulf %0, %1 : vector<4x512xf32>
    %cst_1 = arith.constant 1.000000e-01 : f32
    %3 = vector.broadcast %cst_1 : f32 to vector<4x512xf32>
    %4 = arith.addf %2, %3 : vector<4x512xf32>
    %c0_2 = arith.constant 0 : index
    %c0_3 = arith.constant 0 : index
    %5 = vector.load %arg2[%c0_2, %c0_3] : memref<4x512xf32, #tpu.memory_space<vmem>>, vector<4x512xf32>
    tpu.vector_store %arg2[%c0_2, %c0_3], %4 {strides = array<i32>} : memref<4x512xf32, #tpu.memory_space<vmem>>, vector<4x512xf32>,
    return
  }
  func.func @transform_0(%arg0: i32) -> (i32, i32) {
    %c0_i32 = arith.constant 0 : i32
    %c0_i32_0 = arith.constant 0 : i32
    return %arg0, %c0_i32 : i32, i32
  }
  func.func @transform_1(%arg0: i32) -> (i32, i32) {
    %c0_i32 = arith.constant 0 : i32
    %c0_i32_0 = arith.constant 0 : i32
    return %arg0, %c0_i32 : i32, i32
  }
}

</mosaic_0001>

<llo_original>
// kernel: _augment_tensor.1
$region0: #{_augment_tensor.1}
  #allocation0 [shape = 'u32[]', space=smem, size = 0x4, offset = 0x4, fixed_abs, tag = 'smem constant byte address 0x4 - core index']
  #allocation1 [shape = 'u32[144,128]{1,0:T(1,128)}', space=vmem, size = 0x12000, scoped, tag = 'internal scratch']
  %s0 = inlined_call_operand.vmem [shape: f32[4,512], index: 0, kind: input, shape index: {}]
  %s1 = inlined_call_operand.vmem [shape: f32[4,512], index: 1, kind: output, shape index: {}]
  %s2 = sld [smem:[#allocation0]]
  $region14: #{_augment_tensor.1} parent=0
    _
  %s4 = ssub.s32 1, %s2
  %s5 = scalar_select 0, %s4, %s2
  // Predicated region
  $region2: #{_augment_tensor.1} parent=0 // pred_check
    _
  $region3: #{_augment_tensor.1} parent=0 // pred_check_branch
    %7 = sbr.rel (0) target = $region5
  $region4: #{_augment_tensor.1} parent=0 // pred_region
    _
  $region5: #{_augment_tensor.1} parent=0 // pred_fallthru
    _
  %v8 = vld [vmem:[%s0] sm:$0xff]
  %v9 = vld [vmem:[%s0 + $0x8] sm:$0xff]
  %v10 = vmul.f32 %v8, 1.05
  %v11 = vmul.f32 %v9, 1.05
  %v12 = vadd.f32 %v10, 0.1
  %v13 = vadd.f32 %v11, 0.1
  %14 = vst [vmem:[%s1] sm:$0xff] %v12
  %15 = vst [vmem:[%s1 + $0x8] sm:$0xff] %v13
  // Predicated region
  $region6: #{_augment_tensor.1} parent=0 // pred_check
    _
  $region7: #{_augment_tensor.1} parent=0 // pred_check_branch
    %17 = sbr.rel (0) target = $region9
  $region8: #{_augment_tensor.1} parent=0 // pred_region
    _
  $region9: #{_augment_tensor.1} parent=0 // pred_fallthru
    _
  // Predicated region
  $region10: #{_augment_tensor.1} parent=0 // pred_check
    _
  $region11: #{_augment_tensor.1} parent=0 // pred_check_branch
    %19 = sbr.rel (0) target = $region13
  $region12: #{_augment_tensor.1} parent=0 // pred_region
    _
  $region13: #{_augment_tensor.1} parent=0 // pred_fallthru
    _

</llo_original>
